<compile_context>
chip_gen: v5e
topology: v5e:2x2
jax: 0.10.0
libtpu: 0.0.40
codegen_flags: <defaults>
</compile_context>

<pallas_src>
import functools

import jax
import jax.numpy as jnp
from jax import lax
from jax.experimental import pallas as pl
from jax.experimental.pallas import tpu as pltpu


def _erf_f32(x):
    # Abramowitz & Stegun 7.1.26 rational approximation (|err| <= 1.5e-7).
    # TODO(synk): replace with lax.erf once erf_p lowering is guaranteed on Mosaic.
    a1, a2, a3, a4, a5 = 0.254829592, -0.284496736, 1.421413741, -1.453152027, 1.061405429
    p = 0.3275911
    sgn = jnp.where(x >= 0.0, 1.0, -1.0)
    ax = jnp.abs(x)
    t = pl.reciprocal(1.0 + p * ax, approx=True)      # EUP slot, frees VALU
    poly = ((((a5 * t + a4) * t + a3) * t + a2) * t + a1) * t
    return sgn * (1.0 - poly * jnp.exp(-ax * ax))


def _gelu_exact(x):
    # nn.GELU() default (approximate='none'): 0.5*x*(1+erf(x/sqrt(2)))
    return 0.5 * x * (1.0 + _erf_f32(x * 0.7071067811865476))


def _upconv_gn_gelu_kernel(patch_ref, w_ref, aff_ref, gmat_ref, o_ref, *, eps):
    # patch_ref: (K, AB)  bf16   (leading batch dim squeezed)
    # w_ref:     (R, K)   bf16   R = rows per group-block = GB * s*s*cg
    # aff_ref:   (R, 3)   f32    columns = [conv bias, gn gamma, gn beta]
    # gmat_ref:  (R, R)   f32    block-diagonal same-group mask / (s*s*cg*AB)
    # o_ref:     (R, AB)  bf16

    # --- ConvTranspose2d phases of this group block: one MXU matmul ---
    acc = jnp.dot(w_ref[...], patch_ref[...],
                  preferred_element_type=jnp.float32)            # (R, AB)
    aff = aff_ref[...]
    acc = acc + aff[:, 0:1]                                      # conv bias (f32)

    # --- one-pass GroupNorm (tile-local: groups live inside this row block) ---
    row_sum = jnp.sum(acc, axis=1, keepdims=True)                # (R, 1)  XLU
    row_sq = jnp.sum(acc * acc, axis=1, keepdims=True)           # (R, 1)  XLU
    mean = jnp.dot(gmat_ref[...], row_sum,
                   preferred_element_type=jnp.float32)           # (R, 1) per-group mean
    ex2 = jnp.dot(gmat_ref[...], row_sq,
                  preferred_element_type=jnp.float32)            # (R, 1) per-group E[x^2]
    var = ex2 - mean * mean
    inv = lax.rsqrt(var + eps)
    scale = inv * aff[:, 1:2]
    shift = aff[:, 2:3] - mean * scale
    y = acc * scale + shift          # fused center/scale/shift: no `centered` temp

    # --- GELU (exact-erf variant), store bf16 (lane-dense, unmasked) ---
    o_ref[...] = _gelu_exact(y).astype(o_ref.dtype)


def up_std_conv(x, weight, bias, gn_weight, gn_bias, *,
                kernel_size, stride, padding, output_padding=1,
                group_count, eps=1e-5, out_dtype=jnp.bfloat16):
    """x: (N, C_in, H, W) NCHW.  weight: (C_in, C_out, kH, kW) (PyTorch
    ConvTranspose2d layout).  Returns NCHW output in `out_dtype`."""
    N, C_in, H, W = x.shape
    C_out = weight.shape[1]
    kH = kW = kernel_size
    s = stride
    H_out = (H - 1) * s - 2 * padding + kH + output_padding
    W_out = (W - 1) * s - 2 * padding + kW + output_padding
    if C_out % group_count != 0:
        raise ValueError("C_out must be divisible by group_count")
    if H_out % s != 0 or W_out % s != 0:
        raise ValueError("sub-pixel path requires stride to divide output size")
    A, B = H_out // s, W_out // s
    AB = A * B
    G = group_count
    cg = C_out // G
    PM = s * s * C_out
    rpg = s * s * cg                       # rows per group (group-major order)

    # --- group-block tiling of the row axis (second grid axis) ---------------
    # rows per block must be a sublane multiple (8); GB groups share a block.
    GB = None
    for cand in range(1, G + 1):
        if G % cand == 0 and (cand * rpg) % 8 == 0:
            GB = cand
            break
    if GB is None:
        GB = G                              # whole PM per step (full-dim block)
    rows_pb = GB * rpg
    n_blk = PM // rows_pb

    # ---- sub-pixel decomposition bookkeeping (all static, host side) --------
    # Output row oh = s*a + p gets kernel rows kh with kh ≡ (p+padding) mod s,
    # reading input row ih = a + dh with dh = (p + padding - kh) // s.
    def _off_range(k):
        offs = [(p + padding - kk) // s
                for p in range(s) for kk in range(k)
                if (p + padding - kk) % s == 0]
        return min(offs), max(offs)

    dmin_h, dmax_h = _off_range(kH)
    dmin_w, dmax_w = _off_range(kW)
    Th, Tw = dmax_h - dmin_h + 1, dmax_w - dmin_w + 1
    lo_h, hi_h = max(0, -dmin_h), max(0, (A - 1) + dmax_h - (H - 1))
    lo_w, hi_w = max(0, -dmin_w), max(0, (B - 1) + dmax_w - (W - 1))
    off_h, off_w = dmin_h + lo_h, dmin_w + lo_w
    K = Th * Tw * C_in

    # ---- patches (N, K, AB), built directly in bf16 (halved prepass bytes) ---
    xp = jnp.pad(x.astype(jnp.bfloat16),
                 ((0, 0), (0, 0), (lo_h, hi_h), (lo_w, hi_w)))
    views = []
    for t in range(Th):
        for u in range(Tw):
            v = lax.slice(xp, (0, 0, off_h + t, off_w + u),
                          (N, C_in, off_h + t + A, off_w + u + B))
            views.append(v.reshape(N, C_in, AB))
    patches = jnp.stack(views, axis=1).reshape(N, K, AB)          # bf16

    # ---- stacked per-phase weights, reordered GROUP-MAJOR --------------------
    # row r = g*(s*s*cg) + (p*s+q)*cg + c_local  ->  channel co = g*cg + c_local
    w_f32 = weight.astype(jnp.float32)
    zero_tap = jnp.zeros((C_out, C_in), jnp.float32)
    phase_blocks = []
    for p in range(s):
        for q in range(s):
            taps = []
            for t in range(Th):
                for u in range(Tw):
                    kh = p + padding - s * (dmin_h + t)
                    kw = q + padding - s * (dmin_w + u)
                    if 0 <= kh < kH and 0 <= kw < kW:
                        taps.append(jnp.transpose(w_f32[:, :, kh, kw]))  # (C_out, C_in)
                    else:
                        taps.append(zero_tap)
            phase_blocks.append(jnp.concatenate(taps, axis=1))           # (C_out, K)
    w_phase = jnp.stack(phase_blocks, axis=0).reshape(s, s, C_out, K)
    w_all = (w_phase.reshape(s, s, G, cg, K)
             .transpose(2, 0, 1, 3, 4)                                    # (G,s,s,cg,K)
             .reshape(PM, K)
             .astype(jnp.bfloat16))

    # ---- packed affine params (PM, 3) = [conv bias, gn gamma, gn beta] ------
    def _rows(v):                       # (C_out,) -> (PM,) in (g, p, q, c_local) order
        return jnp.broadcast_to(v.astype(jnp.float32).reshape(G, 1, 1, cg),
                                (G, s, s, cg)).reshape(PM)
    aff = jnp.stack([_rows(bias), _rows(gn_weight), _rows(gn_bias)], axis=1)  # (PM,3)

    # ---- tiny tile-local group-averaging matrix (R, R), block-diagonal ------
    row_grp = jnp.arange(rows_pb) // rpg
    gmat = (row_grp[:, None] == row_grp[None, :]).astype(jnp.float32)
    gmat = gmat / float(rpg * AB)

    # ---- VMEM budget from the actual block sizes (don't hardcode 64 MiB) ----
    def _blk_bytes(shape, itemsize):
        r = shape[-2] if len(shape) >= 2 else 1
        c = shape[-1]
        lead = 1
        for d in shape[:-2]:
            lead *= d
        return lead * (-(-r // 8) * 8) * (-(-c // 128) * 128) * itemsize

    need = 2 * (_blk_bytes((K, AB), 2) + _blk_bytes((rows_pb, K), 2)
                + _blk_bytes((rows_pb, 3), 4) + _blk_bytes((rows_pb, rows_pb), 4)
                + _blk_bytes((rows_pb, AB), 2))
    vmem_limit = int(max(16 * 1024 * 1024,
                         min(48 * 1024 * 1024, need + 4 * 1024 * 1024)))

    kernel = functools.partial(_upconv_gn_gelu_kernel, eps=float(eps))
    out_flat = pl.pallas_call(
        kernel,
        out_shape=jax.ShapeDtypeStruct((N, PM, AB), out_dtype),
        grid_spec=pltpu.PrefetchScalarGridSpec(
            num_scalar_prefetch=0,
            # group-block axis innermost: the patch block index is constant
            # across it, so Pallas fetches each sample's patches only once.
            grid=(N, n_blk),
            in_specs=[
                pl.BlockSpec((None, K, AB), lambda n, g: (n, 0, 0)),
                pl.BlockSpec((rows_pb, K), lambda n, g: (g, 0)),
                pl.BlockSpec((rows_pb, 3), lambda n, g: (g, 0)),
                # grid-invariant and <1 KiB padded: default buffering is fine.
                pl.BlockSpec((rows_pb, rows_pb), lambda n, g: (0, 0)),
            ],
            out_specs=pl.BlockSpec((None, rows_pb, AB), lambda n, g: (n, g, 0)),
        ),
        compiler_params=pltpu.CompilerParams(
            dimension_semantics=("parallel", "parallel"),
            vmem_limit_bytes=vmem_limit,
        ),
    )(patches, w_all, aff, gmat)

    # ---- depth-to-space back to NCHW (pure layout transpose in XLA) ---------
    # rows are (g, p, q, c_local); out[n, g*cg+c, s*a+p, s*b+q]
    out = out_flat.reshape(N, G, s, s, cg, A, B)
    out = jnp.transpose(out, (0, 1, 4, 5, 2, 6, 3))    # (N, G, cg, A, s, B, s)
    return out.reshape(N, C_out, H_out, W_out)


def reference(x, weight, bias, gn_weight, gn_bias, *,
              kernel_size, stride, padding, output_padding, group_count, eps=1e-5):
    """Plain-JAX f32 reference for the same forward pass (NCHW in/out)."""
    kH = kernel_size
    w_t = jnp.transpose(weight[:, :, ::-1, ::-1], (1, 0, 2, 3))  # (C_out, C_in, kH, kW)
    lo = kH - 1 - padding
    hi = lo + output_padding
    y = lax.conv_general_dilated(
        x.astype(jnp.float32), w_t.astype(jnp.float32),
        window_strides=(1, 1),
        padding=((lo, hi), (lo, hi)),
        lhs_dilation=(stride, stride),
        dimension_numbers=("NCHW", "OIHW", "NCHW"),
        precision=lax.Precision.HIGHEST)
    y = y + bias[None, :, None, None]
    N, C, Ho, Wo = y.shape
    g = y.reshape(N, group_count, C // group_count, Ho, Wo)
    mean = g.mean(axis=(2, 3, 4), keepdims=True)
    var = ((g - mean) ** 2).mean(axis=(2, 3, 4), keepdims=True)
    g = (g - mean) / jnp.sqrt(var + eps)
    y = g.reshape(N, C, Ho, Wo) * gn_weight[None, :, None, None] + gn_bias[None, :, None, None]
    return jax.nn.gelu(y, approximate=False)


if __name__ == "__main__":
    # Small shapes consistent with upStdConv (typical 2x upsampling params).
    N, C_in, H, W = 2, 8, 16, 16
    C_out, ksize, stride, padding = 16, 3, 2, 1
    output_padding = 1
    group_count = 32 if C_out % 32 == 0 else 16   # -> 16, as in the module

    key = jax.random.PRNGKey(0)
    k1, k2, k3, k4, k5 = jax.random.split(key, 5)
    x = jax.random.normal(k1, (N, C_in, H, W), jnp.float32)
    w_scale = 1.0 / jnp.sqrt(C_in * ksize * ksize)
    weight = jax.random.normal(k2, (C_in, C_out, ksize, ksize), jnp.float32) * w_scale
    bias = jax.random.normal(k3, (C_out,), jnp.float32) * 0.1
    gn_weight = 1.0 + 0.1 * jax.random.normal(k4, (C_out,), jnp.float32)
    gn_bias = 0.1 * jax.random.normal(k5, (C_out,), jnp.float32)

    out = up_std_conv(x, weight, bias, gn_weight, gn_bias,
                      kernel_size=ksize, stride=stride, padding=padding,
                      output_padding=output_padding, group_count=group_count)
    out = jax.block_until_ready(out)
    assert out.shape == (N, C_out, 2 * H, 2 * W), out.shape

    ref = reference(x, weight, bias, gn_weight, gn_bias,
                    kernel_size=ksize, stride=stride, padding=padding,
                    output_padding=output_padding, group_count=group_count)

    # bf16 MXU inputs + bf16 output (f32 accumulation / GN / GELU epilogue):
    # worst-case rounding on values up to ~4 is ~2-3e-2, typical error a few e-3.
    diff = jnp.abs(out.astype(jnp.float32) - ref)
    max_err = float(jnp.max(diff))
    mean_err = float(jnp.mean(diff))
    if max_err > 5e-2 or mean_err > 1e-2:
        raise AssertionError(
            f"Pallas kernel mismatch vs reference: max abs err={max_err}, "
            f"mean abs err={mean_err}")

    print("KERNEL_OK")
</pallas_src>

<mosaic_0001>
module attributes {stable_mosaic.version = 11 : i64} {
  func.func @_upconv_gn_gelu_kernel(%arg0: i32, %arg1: i32, %arg2: memref<1x32x256xbf16, #tpu.memory_space<vmem>>, %arg3: memref<8x32xbf16, #tpu.memory_space<vmem>>, %arg4: memref<8x3xf32, #tpu.memory_space<vmem>>, %arg5: memref<8x8xf32, #tpu.memory_space<vmem>>, %arg6: memref<1x8x256xbf16, #tpu.memory_space<vmem>>) attributes {dimension_semantics = [#tpu.dimension_semantics<parallel>, #tpu.dimension_semantics<parallel>], iteration_bounds = array<i64: 2, 8>, scalar_prefetch = 0 : i64, scratch_operands = 0 : i64, tpu.core_type = #tpu.core_type<tc>, window_params = [{transform_indices = @transform_0, window_bounds = array<i64: 1, 32, 256>}, {transform_indices = @transform_1, window_bounds = array<i64: 8, 32>}, {transform_indices = @transform_2, window_bounds = array<i64: 8, 3>}, {pipeline_mode = #tpu.pipeline_mode<synchronous>, transform_indices = @transform_3, window_bounds = array<i64: 8, 8>}, {transform_indices = @transform_4, window_bounds = array<i64: 1, 8, 256>}]} {
    %c0 = arith.constant 0 : index
    %c0_0 = arith.constant 0 : index
    %0 = vector.load %arg3[%c0, %c0_0] : memref<8x32xbf16, #tpu.memory_space<vmem>>, vector<8x32xbf16>
    %c0_1 = arith.constant 0 : index
    %c0_2 = arith.constant 0 : index
    %c0_3 = arith.constant 0 : index
    %1 = vector.load %arg2[%c0_1, %c0_2, %c0_3] : memref<1x32x256xbf16, #tpu.memory_space<vmem>>, vector<1x32x256xbf16>
    %2 = vector.shape_cast %1 : vector<1x32x256xbf16> to vector<32x256xbf16>
    %cst = arith.constant dense<0.000000e+00> : vector<8x256xf32>
    %3 = tpu.matmul %0, %2, %cst {dimension_numbers = #tpu.dot_dimension_numbers<[1], [0], [0], [1], [0, 0, 1, 1], [], []>} : vector<8x32xbf16>, vector<32x256xbf16>, vector<8x256xf32> -> vector<8x256xf32>
    %c0_4 = arith.constant 0 : index
    %c0_5 = arith.constant 0 : index
    %4 = vector.load %arg4[%c0_4, %c0_5] : memref<8x3xf32, #tpu.memory_space<vmem>>, vector<8x3xf32>
    %5 = vector.extract_strided_slice %4 {offsets = [0, 0], sizes = [8, 1], strides = [1, 1]} : vector<8x3xf32> to vector<8x1xf32>
    %6 = vector.broadcast %5 : vector<8x1xf32> to vector<8x256xf32>
    %7 = arith.addf %3, %6 : vector<8x256xf32>
    %cst_6 = arith.constant dense<0.000000e+00> : vector<8xf32>
    %8 = vector.multi_reduction <add>, %7, %cst_6 [1] : vector<8x256xf32> to vector<8xf32>
    %9 = vector.shape_cast %8 : vector<8xf32> to vector<8x1xf32>
    %10 = arith.mulf %7, %7 : vector<8x256xf32>
    %cst_7 = arith.constant dense<0.000000e+00> : vector<8xf32>
    %11 = vector.multi_reduction <add>, %10, %cst_7 [1] : vector<8x256xf32> to vector<8xf32>
    %12 = vector.shape_cast %11 : vector<8xf32> to vector<8x1xf32>
    %c0_8 = arith.constant 0 : index
    %c0_9 = arith.constant 0 : index
    %13 = vector.load %arg5[%c0_8, %c0_9] : memref<8x8xf32, #tpu.memory_space<vmem>>, vector<8x8xf32>
    %cst_10 = arith.constant dense<0.000000e+00> : vector<8x1xf32>
    %14 = tpu.matmul %13, %9, %cst_10 {dimension_numbers = #tpu.dot_dimension_numbers<[1], [0], [0], [1], [0, 0, 1, 1], [], []>} : vector<8x8xf32>, vector<8x1xf32>, vector<8x1xf32> -> vector<8x1xf32>
    %c0_11 = arith.constant 0 : index
    %c0_12 = arith.constant 0 : index
    %15 = vector.load %arg5[%c0_11, %c0_12] : memref<8x8xf32, #tpu.memory_space<vmem>>, vector<8x8xf32>
    %cst_13 = arith.constant dense<0.000000e+00> : vector<8x1xf32>
    %16 = tpu.matmul %15, %12, %cst_13 {dimension_numbers = #tpu.dot_dimension_numbers<[1], [0], [0], [1], [0, 0, 1, 1], [], []>} : vector<8x8xf32>, vector<8x1xf32>, vector<8x1xf32> -> vector<8x1xf32>
    %17 = arith.mulf %14, %14 : vector<8x1xf32>
    %18 = arith.subf %16, %17 : vector<8x1xf32>
    %cst_14 = arith.constant 9.99999974E-6 : f32
    %19 = vector.broadcast %cst_14 : f32 to vector<8x1xf32>
    %20 = arith.addf %18, %19 : vector<8x1xf32>
    %21 = math.rsqrt %20 : vector<8x1xf32>
    %22 = vector.extract_strided_slice %4 {offsets = [0, 1], sizes = [8, 1], strides = [1, 1]} : vector<8x3xf32> to vector<8x1xf32>
    %23 = arith.mulf %21, %22 : vector<8x1xf32>
    %24 = vector.extract_strided_slice %4 {offsets = [0, 2], sizes = [8, 1], strides = [1, 1]} : vector<8x3xf32> to vector<8x1xf32>
    %25 = arith.mulf %14, %23 : vector<8x1xf32>
    %26 = arith.subf %24, %25 : vector<8x1xf32>
    %27 = vector.broadcast %23 : vector<8x1xf32> to vector<8x256xf32>
    %28 = arith.mulf %7, %27 : vector<8x256xf32>
    %29 = vector.broadcast %26 : vector<8x1xf32> to vector<8x256xf32>
    %30 = arith.addf %28, %29 : vector<8x256xf32>
    %cst_15 = arith.constant 5.000000e-01 : f32
    %31 = vector.broadcast %cst_15 : f32 to vector<8x256xf32>
    %32 = arith.mulf %31, %30 : vector<8x256xf32>
    %cst_16 = arith.constant 0.707106769 : f32
    %33 = vector.broadcast %cst_16 : f32 to vector<8x256xf32>
    %34 = arith.mulf %30, %33 : vector<8x256xf32>
    %cst_17 = arith.constant 0.000000e+00 : f32
    %35 = vector.broadcast %cst_17 : f32 to vector<8x256xf32>
    %36 = arith.cmpf oge, %34, %35 : vector<8x256xf32>
    %cst_18 = arith.constant 1.000000e+00 : f32
    %cst_19 = arith.constant -1.000000e+00 : f32
    %37 = vector.broadcast %cst_18 : f32 to vector<8x256xf32>
    %38 = vector.broadcast %cst_19 : f32 to vector<8x256xf32>
    %39 = arith.select %36, %37, %38 : vector<8x256xi1>, vector<8x256xf32>
    %40 = math.absf %34 : vector<8x256xf32>
    %cst_20 = arith.constant 0.327591091 : f32
    %41 = vector.broadcast %cst_20 : f32 to vector<8x256xf32>
    %42 = arith.mulf %41, %40 : vector<8x256xf32>
    %cst_21 = arith.constant 1.000000e+00 : f32
    %43 = vector.broadcast %cst_21 : f32 to vector<8x256xf32>
    %44 = arith.addf %43, %42 : vector<8x256xf32>
    %45 = tpu.reciprocal %44 {approx = true} : vector<8x256xf32> -> vector<8x256xf32>
    %cst_22 = arith.constant 1.06140542 : f32
    %46 = vector.broadcast %cst_22 : f32 to vector<8x256xf32>
    %47 = arith.mulf %46, %45 : vector<8x256xf32>
    %cst_23 = arith.constant -1.45315206 : f32
    %48 = vector.broadcast %cst_23 : f32 to vector<8x256xf32>
    %49 = arith.addf %47, %48 : vector<8x256xf32>
    %50 = arith.mulf %49, %45 : vector<8x256xf32>
    %cst_24 = arith.constant 1.42141378 : f32
    %51 = vector.broadcast %cst_24 : f32 to vector<8x256xf32>
    %52 = arith.addf %50, %51 : vector<8x256xf32>
    %53 = arith.mulf %52, %45 : vector<8x256xf32>
    %cst_25 = arith.constant -0.284496725 : f32
    %54 = vector.broadcast %cst_25 : f32 to vector<8x256xf32>
    %55 = arith.addf %53, %54 : vector<8x256xf32>
    %56 = arith.mulf %55, %45 : vector<8x256xf32>
    %cst_26 = arith.constant 0.254829586 : f32
    %57 = vector.broadcast %cst_26 : f32 to vector<8x256xf32>
    %58 = arith.addf %56, %57 : vector<8x256xf32>
    %59 = arith.mulf %58, %45 : vector<8x256xf32>
    %cst_27 = arith.constant 0.000000e+00 : f32
    %60 = vector.broadcast %cst_27 : f32 to vector<8x256xf32>
    %61 = arith.subf %60, %40 : vector<8x256xf32>
    %62 = arith.mulf %61, %40 : vector<8x256xf32>
    %63 = math.exp %62 : vector<8x256xf32>
    %64 = arith.mulf %59, %63 : vector<8x256xf32>
    %cst_28 = arith.constant 1.000000e+00 : f32
    %65 = vector.broadcast %cst_28 : f32 to vector<8x256xf32>
    %66 = arith.subf %65, %64 : vector<8x256xf32>
    %67 = arith.mulf %39, %66 : vector<8x256xf32>
    %cst_29 = arith.constant 1.000000e+00 : f32
    %68 = vector.broadcast %cst_29 : f32 to vector<8x256xf32>
    %69 = arith.addf %68, %67 : vector<8x256xf32>
    %70 = arith.mulf %32, %69 : vector<8x256xf32>
    %71 = arith.truncf %70 : vector<8x256xf32> to vector<8x256xbf16>
    %c0_30 = arith.constant 0 : index
    %c0_31 = arith.constant 0 : index
    %c0_32 = arith.constant 0 : index
    %72 = vector.load %arg6[%c0_30, %c0_31, %c0_32] : memref<1x8x256xbf16, #tpu.memory_space<vmem>>, vector<1x8x256xbf16>
    %73 = vector.shape_cast %72 : vector<1x8x256xbf16> to vector<8x256xbf16>
    %74 = vector.shape_cast %71 : vector<8x256xbf16> to vector<1x8x256xbf16>
    tpu.vector_store %arg6[%c0_30, %c0_31, %c0_32], %74 {strides = array<i32>} : memref<1x8x256xbf16, #tpu.memory_space<vmem>>, vector<1x8x256xbf16>,
    return
  }
  func.func @transform_0(%arg0: i32, %arg1: i32) -> (i32, i32, i32) {
    %c0_i32 = arith.constant 0 : i32
    %c0_i32_0 = arith.constant 0 : i32
    %c0_i32_1 = arith.constant 0 : i32
    return %arg0, %c0_i32, %c0_i32_0 : i32, i32, i32
  }
  func.func @transform_1(%arg0: i32, %arg1: i32) -> (i32, i32) {
    %c0_i32 = arith.constant 0 : i32
    %c0_i32_0 = arith.constant 0 : i32
    return %arg1, %c0_i32 : i32, i32
  }
  func.func @transform_2(%arg0: i32, %arg1: i32) -> (i32, i32) {
    %c0_i32 = arith.constant 0 : i32
    %c0_i32_0 = arith.constant 0 : i32
    return %arg1, %c0_i32 : i32, i32
  }
  func.func @transform_3(%arg0: i32, %arg1: i32) -> (i32, i32) {
    %c0_i32 = arith.constant 0 : i32
    %c0_i32_0 = arith.constant 0 : i32
    %c0_i32_1 = arith.constant 0 : i32
    return %c0_i32, %c0_i32_0 : i32, i32
  }
  func.func @transform_4(%arg0: i32, %arg1: i32) -> (i32, i32, i32) {
    %c0_i32 = arith.constant 0 : i32
    %c0_i32_0 = arith.constant 0 : i32
    return %arg0, %arg1, %c0_i32 : i32, i32, i32
  }
}

</mosaic_0001>

<llo_original>
// kernel: tpu_custom_call.1
$region0: #{tpu_custom_call.1}
  #allocation0 [shape = 'u32[]', space=smem, size = 0x4, offset = 0x4, fixed_abs, tag = 'smem constant byte address 0x4 - core index']
  #allocation1 [shape = 'u32[72,128]{1,0:T(1,128)}', space=vmem, size = 0x9000, scoped, tag = 'internal scratch']
  %s0 = inlined_call_operand.vmem [shape: bf16[2,32,256], index: 0, kind: input, shape index: {}]
  %s1 = inlined_call_operand.vmem [shape: bf16[64,32], index: 1, kind: input, shape index: {}]
  %s2 = inlined_call_operand.vmem [shape: f32[64,3], index: 2, kind: input, shape index: {}]
  %s3 = inlined_call_operand.vmem [shape: f32[8,8], index: 3, kind: input, shape index: {}]
  %s4 = inlined_call_operand.hbm [shape: bf16[2,64,256], index: 4, kind: output, shape index: {}]
  %s5 = sld [smem:[#allocation0]]
  $region49: #{tpu_custom_call.1} parent=0
    _
  %s7 = ssub.s32 1, %s5
  %s8 = scalar_select 0, %s7, %s5
  $region1: #{tpu_custom_call.1} parent=0
    #allocation2 [shape = 'u8[8192]{0}', space=vmem, size = 0x2000, scoped, tag = 'output window, operand 0']
    #allocation3 [shape = 's32[2]{0}', space=sflag, size = 0x8, scoped, tag = 'scoped memory for tpu_custom_call.1']
    %9 = vsyncpa [#allocation3], 0
    %s10 = scalar_lea.sflag [#allocation3], 1
    %11 = vsyncpa %s10, 0
    loop: start=0, step=1, limit=18
    $region2: #{tpu_custom_call.1} parent=1 // loop_pre_header
      _
    $region3: #{tpu_custom_call.1} parent=1 // loop_header
      %s13 = sphi 0, %s17
      %p14 = scmp.ge.s32.totalorder %s13, 18
      %s20 = sphi 0, %s32
      %s21 = sphi 0, %s28
      %s22 = sphi 0, %s20
      %s23 = sphi 0, %s21
      %s24 = sphi 0, %s22
      %s25 = sphi 0, %s23
      %s35 = sphi 0, %s37
      %s38 = sphi 0, %s35
      %s39 = sphi 0, %s38
      %s55 = sphi 0, %s39
      %s61 = sphi 0, %s63
      %s64 = sphi 0, %s61
      %s65 = sphi 0, %s64
      %s81 = sphi 0, %s65
      %s87 = sphi 0, %s89
      %s90 = sphi 0, %s87
      %s91 = sphi 0, %s90
      %s107 = sphi 0, %s91
      %s111 = sphi 0, %s111
      %s113 = sphi 0, %s111
      %s114 = sphi 0, %s113
      %s128 = sphi 0, %s114
      %s136 = sphi 0, %s138
      %s139 = sphi 0, %s136
      %s140 = sphi 0, %s139
      %s156 = sphi 0, %s140
    $region4: #{tpu_custom_call.1} parent=1 // loop_header_branch
      %16 = sbr.rel (%p14) target = $region8
    $region5: #{tpu_custom_call.1} parent=1 // loop_body
      %s18 = ssub.s32 %s13, 1
      %s19 = ssub.s32 %s13, 2
      %s26 = sadd.s32 1, %s21
      %p27 = scmp.ge.s32.totalorder %s26, 8
      %s28 = scalar_select %p27, 0, %s26
      %s29 = sadd.s32 1, %s20
      %s30 = scalar_select %p27, %s29, %s20
      %p31 = scmp.ge.s32.totalorder %s30, 2
      %s32 = scalar_select %p31, 0, %s30
      %s33 = ssub.s32 %s20, %s32
      %p34 = scmp.eq.s32.totalorder %s33, 0
      %s36 = sadd.s32 %s35, 1
      %s37 = scalar_select %p34, %s35, %s36
      %p40 = pneg %p34
      %p41 = scmp.eq.s32.totalorder %s13, 15
      %p42 = por %p40, %p41
      %p43 = scmp.ne.s32.totalorder %s35, %s38
      %p44 = scmp.eq.s32.totalorder %s13, 0
      %p45 = por %p43, %p44
      %p46 = scmp.ne.s32.totalorder %s35, %s38
      %p47 = scmp.eq.s32.totalorder %s18, 15
      %p48 = por %p46, %p47
      %p49 = scmp.ne.s32.totalorder %s38, %s39
      %p50 = scmp.eq.s32.totalorder %s18, 0
      %p51 = por %p49, %p50
      %p52 = scmp.ne.s32.totalorder %s38, %s39
      %p53 = scmp.eq.s32.totalorder %s19, 15
      %p54 = por %p52, %p53
      %p56 = scmp.ne.s32.totalorder %s39, %s55
      %p57 = scmp.eq.s32.totalorder %s19, 0
      %p58 = por %p56, %p57
      %s59 = ssub.s32 %s21, %s28
      %p60 = scmp.eq.s32.totalorder %s59, 0
      %s62 = sadd.s32 %s61, 1
      %s63 = scalar_select %p60, %s61, %s62
      %p66 = pneg %p60
      %p67 = scmp.eq.s32.totalorder %s13, 15
      %p68 = por %p66, %p67
      %p69 = scmp.ne.s32.totalorder %s61, %s64
      %p70 = scmp.eq.s32.totalorder %s13, 0
      %p71 = por %p69, %p70
      %p72 = scmp.ne.s32.totalorder %s61, %s64
      %p73 = scmp.eq.s32.totalorder %s18, 15
      %p74 = por %p72, %p73
      %p75 = scmp.ne.s32.totalorder %s64, %s65
      %p76 = scmp.eq.s32.totalorder %s18, 0
      %p77 = por %p75, %p76
      %p78 = scmp.ne.s32.totalorder %s64, %s65
      %p79 = scmp.eq.s32.totalorder %s19, 15
      %p80 = por %p78, %p79
      %p82 = scmp.ne.s32.totalorder %s65, %s81
      %p83 = scmp.eq.s32.totalorder %s19, 0
      %p84 = por %p82, %p83
      %s85 = ssub.s32 %s21, %s28
      %p86 = scmp.eq.s32.totalorder %s85, 0
      %s88 = sadd.s32 %s87, 1
      %s89 = scalar_select %p86, %s87, %s88
      %p92 = pneg %p86
      %p93 = scmp.eq.s32.totalorder %s13, 15
      %p94 = por %p92, %p93
      %p95 = scmp.ne.s32.totalorder %s87, %s90
      %p96 = scmp.eq.s32.totalorder %s13, 0
      %p97 = por %p95, %p96
      %p98 = scmp.ne.s32.totalorder %s87, %s90
      %p99 = scmp.eq.s32.totalorder %s18, 15
      %p100 = por %p98, %p99
      %p101 = scmp.ne.s32.totalorder %s90, %s91
      %p102 = scmp.eq.s32.totalorder %s18, 0
      %p103 = por %p101, %p102
      %p104 = scmp.ne.s32.totalorder %s90, %s91
      %p105 = scmp.eq.s32.totalorder %s19, 15
      %p106 = por %p104, %p105
      %p108 = scmp.ne.s32.totalorder %s91, %s107
      %p109 = scmp.eq.s32.totalorder %s19, 0
      %p110 = por %p108, %p109
      %s112 = sadd.s32 %s111, 1
      %p115 = scmp.eq.s32.totalorder %s13, 15
      %p116 = scmp.ne.s32.totalorder %s111, %s113
      %p117 = scmp.eq.s32.totalorder %s13, 0
      %p118 = por %p116, %p117
      %p119 = scmp.ne.s32.totalorder %s111, %s113
      %p120 = scmp.eq.s32.totalorder %s18, 15
      %p121 = por %p119, %p120
      %p122 = scmp.ne.s32.totalorder %s113, %s114
      %p123 = scmp.eq.s32.totalorder %s18, 0
      %p124 = por %p122, %p123
      %p125 = scmp.ne.s32.totalorder %s113, %s114
      %p126 = scmp.eq.s32.totalorder %s19, 15
      %p127 = por %p125, %p126
      %p129 = scmp.ne.s32.totalorder %s114, %s128
      %p130 = scmp.eq.s32.totalorder %s19, 0
      %p131 = por %p129, %p130
      %s132 = ssub.s32 %s20, %s32
      %s133 = ssub.s32 %s21, %s28
      %s134 = sor.u32 %s132, %s133
      %p135 = scmp.eq.s32.totalorder %s134, 0
      %s137 = sadd.s32 %s136, 1
      %s138 = scalar_select %p135, %s136, %s137
      %p141 = pneg %p135
      %p142 = scmp.eq.s32.totalorder %s13, 15
      %p143 = por %p141, %p142
      %p144 = scmp.ne.s32.totalorder %s136, %s139
      %p145 = scmp.eq.s32.totalorder %s13, 0
      %p146 = por %p144, %p145
      %p147 = scmp.ne.s32.totalorder %s136, %s139
      %p148 = scmp.eq.s32.totalorder %s18, 15
      %p149 = por %p147, %p148
      %p150 = scmp.ne.s32.totalorder %s139, %s140
      %p151 = scmp.eq.s32.totalorder %s18, 0
      %p152 = por %p150, %p151
      %p153 = scmp.ne.s32.totalorder %s139, %s140
      %p154 = scmp.eq.s32.totalorder %s19, 15
      %p155 = por %p153, %p154
      %p157 = scmp.ne.s32.totalorder %s140, %s156
      %p158 = scmp.eq.s32.totalorder %s19, 0
      %p159 = por %p157, %p158
      %p160 = scmp.le.s32.totalorder 1, %s13
      %p161 = scmp.lt.s32.totalorder %s13, 17
      %p162 = pnand %p160, %p161
      %p163 = pneg %p162
      // Predicated region
      $region9: #{tpu_custom_call.1} parent=5 // pred_check
        _
      $region10: #{tpu_custom_call.1} parent=5 // pred_check_branch
        %165 = sbr.rel (%p162) target = $region12
      $region11: #{tpu_custom_call.1} parent=5 // pred_region
        %s166 = ssub.s32 %s13, 1
        // Predicated region
        $region13: #{tpu_custom_call.1} parent=11 // pred_check
          %p167 = pneg %p124
        $region14: #{tpu_custom_call.1} parent=11 // pred_check_branch
          %169 = sbr.rel (%p167) target = $region16
        $region15: #{tpu_custom_call.1} parent=11 // pred_region
          _
        $region16: #{tpu_custom_call.1} parent=11 // pred_fallthru
          _
      $region12: #{tpu_custom_call.1} parent=5 // pred_fallthru
        _
      %p170 = scmp.lt.s32.totalorder %s13, 16
      // Predicated region
      $region17: #{tpu_custom_call.1} parent=5 // pred_check
        %p171 = pneg %p170
      $region18: #{tpu_custom_call.1} parent=5 // pred_check_branch
        %173 = sbr.rel (%p171) target = $region20
      $region19: #{tpu_custom_call.1} parent=5 // pred_region
        // Predicated region
        $region21: #{tpu_custom_call.1} parent=19 // pred_check
          %p174 = pneg %p45
        $region22: #{tpu_custom_call.1} parent=19 // pred_check_branch
          %176 = sbr.rel (%p174) target = $region24
        $region23: #{tpu_custom_call.1} parent=19 // pred_region
          %p177 = scmp.lt.s32.totalorder %s20, 1
          %s178 = scalar_select %p177, %s20, 1
          %s179 = smul.addr %s178, 8
          %s180 = smul.addr %s179, 4
          %s181 = scalar_lea.vmem %s0, %s180
        $region24: #{tpu_custom_call.1} parent=19 // pred_fallthru
          _
        // Predicated region
        $region25: #{tpu_custom_call.1} parent=19 // pred_check
          %p182 = pneg %p71
        $region26: #{tpu_custom_call.1} parent=19 // pred_check_branch
          %184 = sbr.rel (%p182) target = $region28
        $region27: #{tpu_custom_call.1} parent=19 // pred_region
          %p185 = scmp.lt.s32.totalorder %s21, 7
          %s186 = scalar_select %p185, %s21, 7
          %s187 = smul.addr %s186, 4
          %s188 = scalar_lea.vmem %s1, %s187
        $region28: #{tpu_custom_call.1} parent=19 // pred_fallthru
          _
        // Predicated region
        $region29: #{tpu_custom_call.1} parent=19 // pred_check
          %p189 = pneg %p97
        $region30: #{tpu_custom_call.1} parent=19 // pred_check_branch
          %191 = sbr.rel (%p189) target = $region32
        $region31: #{tpu_custom_call.1} parent=19 // pred_region
          %p192 = scmp.lt.s32.totalorder %s21, 7
          %s193 = scalar_select %p192, %s21, 7
          %s194 = smul.addr %s193, 8
          %s195 = scalar_lea.vmem %s2, %s194
        $region32: #{tpu_custom_call.1} parent=19 // pred_fallthru
          _
      $region20: #{tpu_custom_call.1} parent=5 // pred_fallthru
        _
      %p196 = scmp.le.s32.totalorder 1, %s13
      %p197 = scmp.lt.s32.totalorder %s13, 17
      %p198 = pnand %p196, %p197
      %p199 = pneg %p198
      // Predicated region
      $region33: #{tpu_custom_call.1} parent=5 // pred_check
        _
      $region34: #{tpu_custom_call.1} parent=5 // pred_check_branch
        %201 = sbr.rel (%p198) target = $region36
      $region35: #{tpu_custom_call.1} parent=5 // pred_region
        %s202 = ssub.s32 %s13, 1
        %p203 = scmp.lt.s32.totalorder %s22, 1
        %s204 = scalar_select %p203, %s22, 1
        %s205 = smul.addr %s204, 8
        %s206 = smul.addr %s205, 4
        %s207 = scalar_lea.vmem %s0, %s206
        %p208 = pneg %p51
        %p209 = pneg %p48
        %p210 = scmp.lt.s32.totalorder %s23, 7
        %s211 = scalar_select %p210, %s23, 7
        %s212 = smul.addr %s211, 4
        %s213 = scalar_lea.vmem %s1, %s212
        %p214 = pneg %p77
        %p215 = pneg %p74
        %p216 = scmp.lt.s32.totalorder %s23, 7
        %s217 = scalar_select %p216, %s23, 7
        %s218 = smul.addr %s217, 8
        %s219 = scalar_lea.vmem %s2, %s218
        %p220 = pneg %p103
        %p221 = pneg %p100
        %p222 = pneg %p124
        %p223 = pneg %p121
        %p224 = pneg %p152
        %p225 = pneg %p149
        %s226 = sand.u32 %s139, 1
        %s227 = scalar_lea.sflag [#allocation3], %s226
        %s228 = sand.u32 %s139, 1
        %s229 = smul.addr %s228, 8
        %s230 = scalar_lea.vmem [#allocation2], %s229
        %p231 = scmp.lt.s32.totalorder %s22, 1
        %s232 = scalar_select %p231, %s22, 1
        %s233 = smul.addr %s232, 8
        %s234 = smul.addr %s233, 4
        %s235 = scalar_lea.vmem %s0, %s234
        %p236 = scmp.lt.s32.totalorder %s23, 7
        %s237 = scalar_select %p236, %s23, 7
        %s238 = smul.addr %s237, 4
        %s239 = scalar_lea.vmem %s1, %s238
        %p240 = scmp.lt.s32.totalorder %s23, 7
        %s241 = scalar_select %p240, %s23, 7
        %s242 = smul.addr %s241, 8
        %s243 = scalar_lea.vmem %s2, %s242
        %v245 = vld [vmem:[%s239] sm:$0xf]
        %v246 = vld [vmem:[%s235] sm:$0xff]
        %v247 = vld [vmem:[%s235 + $0x8] sm:$0xff]
        %v248 = vld [vmem:[%s235 + $0x10] sm:$0xff]
        %v249 = vld [vmem:[%s235 + $0x18] sm:$0xff]
        %v250 = vld [vmem:[%s243] sm:$0xff]
        %252 = vset.pattern.permute.xlu0 0
        %253 = vperm.xlu0 %252, %v250
        %v254 = vpop.permute.xlu0 %253
        %v260 = vunpack.c.l.b16 %v246
        %v261 = vunpack.c.h.b16 %v246
        %v262 = vunpack.c.l.b16 %v247
        %v263 = vunpack.c.h.b16 %v247
        %v264 = vunpack.c.l.b16 %v248
        %v265 = vunpack.c.h.b16 %v248
        %v266 = vunpack.c.l.b16 %v249
        %v267 = vunpack.c.h.b16 %v249
        %v268 = vpack.c.b16 %v262, %v260
        %v269 = vpack.c.b16 %v263, %v261
        %v270 = vpack.c.b16 %v266, %v264
        %v271 = vpack.c.b16 %v267, %v265
        %vm276 = vcmask 261120
        %v278 = vsel %vm276, %v245, 0
        %280 = vmatpush.bf16.msra.mxu0 0
        %281 = vmatpush.bf16.msra.mxu0 0
        %282 = vmatpush.bf16.msra.mxu0 0
        %283 = vmatpush.bf16.msra.mxu0 0
        %284 = vmatpush.bf16.msra.mxu0 0
        %285 = vmatpush.bf16.msra.mxu0 0
        %286 = vmatpush.bf16.msra.mxu0 %v270
        %287 = vmatpush.bf16.msra.mxu0 %v268
        %288 = vmatmul.bf16.gmra.mxu0 %v278
        %v289 = vpop.f32.mrf.mxu0
        %v290 = vadd.f32 %v254, %v289
        %v291 = vpop.f32.mrf.mxu0
        %292 = vdwg.mxu0
        %293 = vmatpush.bf16.msra.mxu0 0
        %294 = vmatpush.bf16.msra.mxu0 0
        %295 = vmatpush.bf16.msra.mxu0 0
        %296 = vmatpush.bf16.msra.mxu0 0
        %297 = vmatpush.bf16.msra.mxu0 0
        %298 = vmatpush.bf16.msra.mxu0 0
        %299 = vmatpush.bf16.msra.mxu0 %v271
        %300 = vmatpush.bf16.msra.mxu0 %v269
        %301 = vmatmul.bf16.gmra.mxu0 %v278
        %v302 = vpop.f32.mrf.mxu0
        %v303 = vadd.f32 %v254, %v302
        %v304 = vpop.f32.mrf.mxu0
        %305 = vdwg.mxu0
        %v306 = vadd.f32 %v290, %v303
        %307 = vadd.xlane.f32.xlu0 %v306
        %v308 = vpop.xlane.xlu0 %307
        %v309 = vmul.f32 %v290, %v290
        %v310 = vmul.f32 %v303, %v303
        %v311 = vadd.f32 %v309, %v310
        %312 = vadd.xlane.f32.xlu0 %v311
        %v313 = vpop.xlane.xlu0 %312
        %v314 = vld [vmem:[%s3] sm:$0xff]
        %vm315 = vcmask 64512
        %v317 = vsel %vm315, %v314, 0
        %319 = vmatpush.msra.mxu0 0.0
        %320 = vmatpush.msra.mxu0 0.0
        %321 = vmatpush.msra.mxu0 0.0
        %322 = vmatpush.msra.mxu0 0.0
        %323 = vmatpush.msra.mxu0 0.0
        %324 = vmatpush.msra.mxu0 0.0
        %325 = vmatpush.msra.mxu0 0.0
        %326 = vmatpush.msra.mxu0 0.0
        %327 = vmatpush.msra.mxu0 0.0
        %328 = vmatpush.msra.mxu0 0.0
        %329 = vmatpush.msra.mxu0 0.0
        %330 = vmatpush.msra.mxu0 0.0
        %331 = vmatpush.msra.mxu0 0.0
        %332 = vmatpush.msra.mxu0 0.0
        %333 = vmatpush.msra.mxu0 0.0
        %334 = vmatpush.msra.mxu0 %v308
        %335 = vmatmul.f32.gmra.mxu0 %v317
        %v336 = vpop.f32.mrf.mxu0
        %v337 = vadd.f32 0.0, %v336
        %338 = vdwg.mxu0
        %339 = vmatpush.msra.mxu0 0.0
        %340 = vmatpush.msra.mxu0 0.0
        %341 = vmatpush.msra.mxu0 0.0
        %342 = vmatpush.msra.mxu0 0.0
        %343 = vmatpush.msra.mxu0 0.0
        %344 = vmatpush.msra.mxu0 0.0
        %345 = vmatpush.msra.mxu0 0.0
        %346 = vmatpush.msra.mxu0 0.0
        %347 = vmatpush.msra.mxu0 0.0
        %348 = vmatpush.msra.mxu0 0.0
        %349 = vmatpush.msra.mxu0 0.0
        %350 = vmatpush.msra.mxu0 0.0
        %351 = vmatpush.msra.mxu0 0.0
        %352 = vmatpush.msra.mxu0 0.0
        %353 = vmatpush.msra.mxu0 0.0
        %354 = vmatpush.msra.mxu0 %v313
        %355 = vmatmul.f32.gmra.mxu0 %v317
        %v356 = vpop.f32.mrf.mxu0
        %v357 = vadd.f32 0.0, %v356
        %358 = vdwg.mxu0
        %v359 = vmul.f32 %v337, %v337
        %v360 = vsub.f32 %v357, %v359
        %v361 = vadd.f32 %v360, 1e-05
        %v362 = vrsqrt.pop %v361
        %v363 = vmul.f32 %v362, %v361
        %v364 = vmul.f32 %v363, %v362
        %v365 = vmul.f32 0.5, %v364
        %v366 = vsub.f32 1.5, %v365
        %v367 = vmul.f32 %v362, %v366
        %vm368 = vweird.f32 %v361
        %vm369 = vweird.f32 %v362
        %vm370 = vmor %vm368, %vm369
        %v371 = vsel %vm370, %v362, %v367
        %372 = vrot.lane.b32.xlu0 %v250, 127
        %v373 = vpop.permute.xlu0 %372
        %v375 = vmul.f32 %v371, %v373
        %v376 = vmul.f32 %v337, %v375
        %378 = vrot.lane.b32.xlu0 %v376, 2
        %v379 = vpop.permute.xlu0 %378
        %v381 = vsub.f32 %v250, %v379
        %383 = vset.pattern.permute.xlu0 0
        %384 = vperm.xlu0 %383, %v375
        %v385 = vpop.permute.xlu0 %384
        %v387 = vmul.f32 %v290, %v385
        %v388 = vmul.f32 %v303, %v385
        %390 = vset.pattern.permute.xlu0 2
        %391 = vperm.xlu0 %390, %v381
        %v392 = vpop.permute.xlu0 %391
        %v394 = vadd.f32 %v387, %v392
        %v395 = vadd.f32 %v388, %v392
        %v396 = vmul.f32 %v394, 0.5
        %v397 = vmul.f32 %v395, 0.5
        %v398 = vmul.f32 %v394, 0.70710677
        %v399 = vmul.f32 %v395, 0.70710677
        %vm400 = vcmp.ge.f32.partialorder %v398, 0.0
        %vm401 = vcmp.ge.f32.partialorder %v399, 0.0
        %v402 = vsel %vm400, 1.0, -1.0
        %v403 = vsel %vm401, 1.0, -1.0
        %v404 = vand.u32 2147483647, %v398
        %v405 = vand.u32 2147483647, %v399
        %v406 = vmul.f32 %v404, 0.3275911
        %v407 = vmul.f32 %v405, 0.3275911
        %v408 = vadd.f32 %v406, 1.0
        %v409 = vadd.f32 %v407, 1.0
        %v410 = vrcp.pop %v408
        %v411 = vrcp.pop %v409
        %v412 = vmul.f32 %v410, 1.0614054
        %v413 = vmul.f32 %v411, 1.0614054
        %v414 = vadd.f32 %v412, -1.4531521
        %v415 = vadd.f32 %v413, -1.4531521
        %v416 = vmul.f32 %v414, %v410
        %v417 = vmul.f32 %v415, %v411
        %v418 = vadd.f32 %v416, 1.4214138
        %v419 = vadd.f32 %v417, 1.4214138
        %v420 = vmul.f32 %v418, %v410
        %v421 = vmul.f32 %v419, %v411
        %v422 = vadd.f32 %v420, -0.28449672
        %v423 = vadd.f32 %v421, -0.28449672
        %v424 = vmul.f32 %v422, %v410
        %v425 = vmul.f32 %v423, %v411
        %v426 = vadd.f32 %v424, 0.2548296
        %v427 = vadd.f32 %v425, 0.2548296
        %v428 = vmul.f32 %v426, %v410
        %v429 = vmul.f32 %v427, %v411
        %v430 = vsub.f32 0.0, %v404
        %v431 = vsub.f32 0.0, %v405
        %v432 = vmul.f32 %v430, %v404
        %v433 = vmul.f32 %v431, %v405
        %v434 = vmul.f32 %v432, 1.442695
        %v435 = vpow.pop %v434
        %v436 = vmul.f32 %v433, 1.442695
        %v437 = vpow.pop %v436
        %v438 = vmul.f32 %v428, %v435
        %v439 = vmul.f32 %v429, %v437
        %v440 = vsub.f32 1.0, %v438
        %v441 = vsub.f32 1.0, %v439
        %v442 = vmul.f32 %v402, %v440
        %v443 = vmul.f32 %v403, %v441
        %v444 = vadd.f32 %v442, 1.0
        %v445 = vadd.f32 %v443, 1.0
        %v446 = vmul.f32 %v396, %v444
        %v447 = vmul.f32 %v397, %v445
        %v448 = vpack.c.bf16 %v447, %v446
        %449 = vst [vmem:[%s230] sm:$0xff] %v448
        %s450 = sand.u32 %s139, 1
        %s451 = scalar_lea.sflag [#allocation3], %s450
        %s452 = sand.u32 %s139, 1
        %s453 = smul.addr %s452, 8
        %s454 = scalar_lea.vmem [#allocation2], %s453
        // Predicated region
        $region37: #{tpu_custom_call.1} parent=35 // pred_check
          %p455 = pneg %p149
        $region38: #{tpu_custom_call.1} parent=35 // pred_check_branch
          %457 = sbr.rel (%p455) target = $region40
        $region39: #{tpu_custom_call.1} parent=35 // pred_region
          %459 = vsyncadd %s451, 0
          %s460 = smul.addr %s23, 2
          %s461 = smul.addr %s22, 16
          %s462 = sadd.s32 %s460, %s461
          %s463 = smul.addr %s462, 4
          %s464 = scalar_lea.hbm %s4, %s463
          %s466 = sshll.u32 %s454, 4
          %s467 = int_to_ptr.vmem [resolvable:$true] %s466
          %s468 = sshll.u32 %s464, 4
          %s469 = int_to_ptr.hbm [resolvable:$true] %s468
          %471 = dma.vmem_to_hbm [thread:$0]  %s467, 128, %s469, %s451
        $region40: #{tpu_custom_call.1} parent=35 // pred_fallthru
          _
      $region36: #{tpu_custom_call.1} parent=5 // pred_fallthru
        _
      %p472 = scmp.le.s32.totalorder 2, %s13
      // Predicated region
      $region41: #{tpu_custom_call.1} parent=5 // pred_check
        %p473 = pneg %p472
      $region42: #{tpu_custom_call.1} parent=5 // pred_check_branch
        %475 = sbr.rel (%p473) target = $region44
      $region43: #{tpu_custom_call.1} parent=5 // pred_region
        %s476 = ssub.s32 %s13, 2
        // Predicated region
        $region45: #{tpu_custom_call.1} parent=43 // pred_check
          %p477 = pneg %p155
        $region46: #{tpu_custom_call.1} parent=43 // pred_check_branch
          %479 = sbr.rel (%p477) target = $region48
        $region47: #{tpu_custom_call.1} parent=43 // pred_region
          %s480 = sand.u32 %s140, 1
          %s481 = scalar_lea.sflag [#allocation3], %s480
          %s482 = sand.u32 %s140, 1
          %s483 = smul.addr %s482, 8
          %s484 = scalar_lea.vmem [#allocation2], %s483
          %486 = dma.done %s481, 128
        $region48: #{tpu_custom_call.1} parent=43 // pred_fallthru
          _
      $region44: #{tpu_custom_call.1} parent=5 // pred_fallthru
        _
    $region6: #{tpu_custom_call.1} parent=1 // loop_footer
      %s17 = sadd.s32 1, %s13
    $region7: #{tpu_custom_call.1} parent=1 // loop_footer_branch
      %12 = sbr.rel target = $region3
    $region8: #{tpu_custom_call.1} parent=1 // loop_exit
      _
    %487 = vsyncpa [#allocation3], 1
    %s488 = scalar_lea.sflag [#allocation3], 1
    %489 = vsyncpa %s488, 1

</llo_original>
